<compile_context>
chip_gen: v6e
topology: v6e:2x2x1
jax: 0.10.0
libtpu: 0.0.40
codegen_flags: <defaults>
</compile_context>

<pallas_src>
import functools

import jax
import jax.numpy as jnp
from jax.experimental import pallas as pl
from jax.experimental.pallas import tpu as pltpu


def _copy_kernel(x_ref, o_ref):
    # Elementwise pass-through on the current lane-dense VMEM tile.
    o_ref[...] = x_ref[...]


# Candidate lane widths (last dim of the 2-D view).  All are multiples of 128
# so every store is a full, unmasked vst.  Largest divisor of the flattened
# size wins; if none divides, the fast path returns x directly.
_LANE_CANDIDATES = (1024, 512, 256, 128)


def _sublane_multiple(dtype) -> int:
    # Minimum second-minor tile multiple: 8 for 32-bit, 16 for bf16, 32 for int8.
    itemsize = jnp.dtype(dtype).itemsize
    return max(8, 32 // max(itemsize, 1))


@functools.lru_cache(maxsize=None)
def _device_tuning():
    """Returns (target_tile_bytes, vmem_limit_bytes_or_None, min_grid_blocks)."""
    try:
        kind = jax.devices()[0].device_kind.lower()
    except Exception:  # no backend info -> conservative defaults
        kind = ""
    is_v5e = ("v5e" in kind) or ("v5 lite" in kind) or ("v5litepod" in kind)
    is_v7 = ("v7" in kind) or ("tpu7" in kind) or ("tpu 7" in kind)
    if is_v5e:
        # 2 MiB tiles -> 2 in + 2 out double-buffered = 8 MiB, under the
        # 16 MiB default scoped-VMEM limit; no need to raise the limit.
        return 2 * 1024 * 1024, None, 1
    # v6e / v7x: 4 MiB tiles (16 MiB double-buffered footprint), explicit
    # scoped-VMEM limit with headroom (well under 128 MiB on v6e and under the
    # 64 MiB/TC physical VMEM on v7x).  On v7x ask for >=2 grid blocks so the
    # "parallel" row axis can shard across both TensorCores.
    return 4 * 1024 * 1024, 40 << 20, (2 if is_v7 else 1)


def _pallas_identity(x: jax.Array, lane: int) -> jax.Array:
    orig_shape = x.shape
    dtype = x.dtype
    itemsize = jnp.dtype(dtype).itemsize
    rows = x.size // lane
    sub = _sublane_multiple(dtype)
    tile_bytes, vmem_limit, min_blocks = _device_tuning()

    # Rows per block derived from a target tile byte size (keeps per-step DMAs
    # large for bf16/int8 too), rounded down to the sublane packing multiple.
    tm = max(sub, (tile_bytes // (lane * itemsize)) // sub * sub)
    tm = min(tm, rows)  # single full-extent block is always layout-legal
    if min_blocks > 1 and rows >= min_blocks * sub and pl.cdiv(rows, tm) < min_blocks:
        # v7x megacore: split the row axis so both TensorCores get work.
        per_core = (rows + min_blocks - 1) // min_blocks
        tm = max(sub, ((per_core + sub - 1) // sub) * sub)

    grid = (pl.cdiv(rows, tm),)
    x2d = x.reshape(rows, lane)

    out2d = pl.pallas_call(
        _copy_kernel,
        out_shape=jax.ShapeDtypeStruct((rows, lane), dtype),
        grid=grid,
        in_specs=[pl.BlockSpec((tm, lane), lambda i: (i, 0))],
        out_specs=pl.BlockSpec((tm, lane), lambda i: (i, 0)),
        compiler_params=pltpu.CompilerParams(
            dimension_semantics=("parallel",),
            vmem_limit_bytes=vmem_limit,
        ),
        cost_estimate=pl.CostEstimate(
            flops=0,
            transcendentals=0,
            bytes_accessed=2 * rows * lane * itemsize,
        ),
    )(x2d)

    return out2d.reshape(orig_shape)


@jax.jit
def base_feature_extractor_forward(x: jax.Array) -> jax.Array:
    """Forward of BaseFeatureExtractor (abstract base => identity contract).

    Uses a lane-dense, tiled, double-buffered Pallas copy when the flattened
    size is an exact multiple of a 128-lane width; otherwise (empty arrays or
    ragged sizes) the identity is returned directly, since padding + slicing
    would cost ~3x the HBM traffic of the copy itself.
    """
    total = x.size
    if total == 0:
        return x  # avoids a 0-size grid; identity is exact
    lane = next((l for l in _LANE_CANDIDATES if total % l == 0), None)
    if lane is None:
        # TODO(synk): abstract forward has no compute; identity without a
        # kernel is the exact (and fastest) result for ragged sizes.
        return x
    return _pallas_identity(x, lane)


if __name__ == "__main__":
    key = jax.random.PRNGKey(0)

    # Small NCHW input consistent with a feature-extractor forward.
    # 2*4*16*16 = 2048 elements = 2 x 1024 lanes -> exercises the Pallas path.
    x = jax.random.normal(key, (2, 4, 16, 16), dtype=jnp.float32)
    y = base_feature_extractor_forward(x)
    jax.block_until_ready(y)
    assert y.shape == x.shape
    assert y.dtype == x.dtype
    assert bool(jnp.all(y == x))

    # Ragged size -> fast path (pure identity, no kernel, no padding traffic).
    xr = jax.random.normal(jax.random.PRNGKey(1), (3, 5, 7), dtype=jnp.float32)
    yr = base_feature_extractor_forward(xr)
    jax.block_until_ready(yr)
    assert yr.shape == xr.shape and bool(jnp.all(yr == xr))

    print("KERNEL_OK")
</pallas_src>

<mosaic_0001>
module attributes {stable_mosaic.version = 11 : i64} {
  func.func @_copy_kernel(%arg0: i32, %arg1: memref<2x1024xf32, #tpu.memory_space<vmem>>, %arg2: memref<2x1024xf32, #tpu.memory_space<vmem>>) attributes {dimension_semantics = [#tpu.dimension_semantics<parallel>], iteration_bounds = array<i64: 1>, scalar_prefetch = 0 : i64, scratch_operands = 0 : i64, tpu.core_type = #tpu.core_type<tc>, window_params = [{transform_indices = @transform_0, window_bounds = array<i64: 2, 1024>}, {transform_indices = @transform_1, window_bounds = array<i64: 2, 1024>}]} {
    %c0 = arith.constant 0 : index
    %c0_0 = arith.constant 0 : index
    %0 = vector.load %arg1[%c0, %c0_0] : memref<2x1024xf32, #tpu.memory_space<vmem>>, vector<2x1024xf32>
    %c0_1 = arith.constant 0 : index
    %c0_2 = arith.constant 0 : index
    %1 = vector.load %arg2[%c0_1, %c0_2] : memref<2x1024xf32, #tpu.memory_space<vmem>>, vector<2x1024xf32>
    tpu.vector_store %arg2[%c0_1, %c0_2], %0 {strides = array<i32>} : memref<2x1024xf32, #tpu.memory_space<vmem>>, vector<2x1024xf32>,
    return
  }
  func.func @transform_0(%arg0: i32) -> (i32, i32) {
    %c0_i32 = arith.constant 0 : i32
    %c0_i32_0 = arith.constant 0 : i32
    return %arg0, %c0_i32 : i32, i32
  }
  func.func @transform_1(%arg0: i32) -> (i32, i32) {
    %c0_i32 = arith.constant 0 : i32
    %c0_i32_0 = arith.constant 0 : i32
    return %arg0, %c0_i32 : i32, i32
  }
}

</mosaic_0001>

<llo_original>
// kernel: base_feature_extractor_forward.1
$region0: #{base_feature_extractor_forward.1}
  #allocation0 [shape = 'u32[]', space=smem, size = 0x4, offset = 0x4, fixed_abs, tag = 'smem constant byte address 0x4 - core index']
  #allocation1 [shape = 'u32[144,128]{1,0:T(1,128)}', space=vmem, size = 0x12000, scoped, tag = 'internal scratch']
  %s0 = inlined_call_operand.vmem [shape: f32[2,1024], index: 0, kind: input, shape index: {}]
  %s1 = inlined_call_operand.vmem [shape: f32[2,1024], index: 1, kind: output, shape index: {}]
  %s2 = sld [smem:[#allocation0]]
  $region14: #{base_feature_extractor_forward.1} parent=0
    _
  %s4 = ssub.s32 1, %s2
  %s5 = scalar_select 0, %s4, %s2
  // Predicated region
  $region2: #{base_feature_extractor_forward.1} parent=0 // pred_check
    _
  $region3: #{base_feature_extractor_forward.1} parent=0 // pred_check_branch
    %7 = sbr.rel (0) target = $region5
  $region4: #{base_feature_extractor_forward.1} parent=0 // pred_region
    _
  $region5: #{base_feature_extractor_forward.1} parent=0 // pred_fallthru
    _
  %v8 = vld [vmem:[%s0] sm:$0xff]
  %v9 = vld [vmem:[%s0 + $0x8] sm:$0xff]
  %10 = vst [vmem:[%s1] sm:$0xff] %v8
  %11 = vst [vmem:[%s1 + $0x8] sm:$0xff] %v9
  // Predicated region
  $region6: #{base_feature_extractor_forward.1} parent=0 // pred_check
    _
  $region7: #{base_feature_extractor_forward.1} parent=0 // pred_check_branch
    %13 = sbr.rel (0) target = $region9
  $region8: #{base_feature_extractor_forward.1} parent=0 // pred_region
    _
  $region9: #{base_feature_extractor_forward.1} parent=0 // pred_fallthru
    _
  // Predicated region
  $region10: #{base_feature_extractor_forward.1} parent=0 // pred_check
    _
  $region11: #{base_feature_extractor_forward.1} parent=0 // pred_check_branch
    %15 = sbr.rel (0) target = $region13
  $region12: #{base_feature_extractor_forward.1} parent=0 // pred_region
    _
  $region13: #{base_feature_extractor_forward.1} parent=0 // pred_fallthru
    _

</llo_original>
